<compile_context>
chip_gen: v7x
topology: tpu7x:2x2x1
jax: 0.10.0
libtpu: 0.0.40
codegen_flags: <defaults>
</compile_context>

<pallas_src>
import jax
import jax.numpy as jnp
from jax.experimental import pallas as pl
from jax.experimental.pallas import tpu as pltpu


def _round_up(x, m):
    return ((x + m - 1) // m) * m


def wsd_kernel(x_ref, wao_ref, eyt_ref, g_ref, b_ref, y_ref, a_ref):
    tb, n, d = x_ref.shape
    y_pad = y_ref.shape[2]
    n_pad = a_ref.shape[2]

    x = x_ref[...]                                            # (tb, n, d) bf16
    # Flatten for the tall fused weight matmul.  For bf16 this reshape is a
    # layout no-op when n % 16 == 0; otherwise one small repack per grid step.
    x_flat = x.reshape(tb * n, d)

    # Fused W_A|W_O as one (d, 2d) RHS: fills the 256-wide MXU (v6e/v7x) and
    # streams x_flat over the MXU once instead of twice.  f32 accumulation.
    qwxo = jnp.dot(x_flat, wao_ref[...],
                   preferred_element_type=jnp.float32)        # (tb*n, 2d) f32
    qw = qwxo[:, :d].reshape(tb, n, d).astype(jnp.bfloat16)   # X @ W_A
    xo = qwxo[:, d:].reshape(tb, n, d).astype(jnp.bfloat16)   # X @ W_O

    # logits = (X W_A) X^T : contract the shared D axis in place
    # (no explicit transpose materialized).
    logits = jnp.einsum("bnd,bmd->bnm", qw, x,
                        preferred_element_type=jnp.float32)   # (tb, n, n) f32

    # Softmax over keys (max-subtracted); exp + approx reciprocal use the EUP.
    m = jnp.max(logits, axis=-1, keepdims=True)
    e = jnp.exp(logits - m)
    a = e * pl.reciprocal(jnp.sum(e, axis=-1, keepdims=True), approx=True)

    # Q_c = A @ (X W_O) — batched contraction, bf16 MXU operands, f32 acc.
    qc = jnp.einsum("bnm,bmd->bnd", a.astype(jnp.bfloat16), xo,
                    preferred_element_type=jnp.float32)       # (tb, n, d) f32

    # H = LayerNorm(Q_c + Q) over D in f32 (eps = 1e-5, learnable gamma/beta).
    h = (qc + x.astype(jnp.float32)).reshape(tb * n, d)
    mu = jnp.mean(h, axis=-1, keepdims=True)
    var = jnp.mean((h - mu) ** 2, axis=-1, keepdims=True)
    hn = (h - mu) * jax.lax.rsqrt(var + 1e-5)
    hn = hn * g_ref[...] + b_ref[...]                         # (1, d) broadcasts

    # y = H @ E_y^T with E_y pre-transposed / zero-padded to (d, y_pad):
    # plain K-major matmul and a lane-dense (multiple-of-128) output store.
    y = jnp.dot(hn.astype(jnp.bfloat16), eyt_ref[...],
                preferred_element_type=jnp.float32)           # (tb*n, y_pad)
    y_ref[...] = y.reshape(tb, n, y_pad)

    # Lane-dense A store: zero-pad the key dim to a multiple of 128 so the
    # write is an unmasked full-lane store; the wrapper slices the pad off.
    if n_pad != n:
        a = jnp.concatenate(
            [a, jnp.zeros((tb, n, n_pad - n), jnp.float32)], axis=-1)
    a_ref[...] = a


def _vmem_budget_and_steps_pref():
    """Generation-aware VMEM budget and whether to prefer >= 2 grid steps."""
    try:
        kind = jax.devices()[0].device_kind.lower()
    except Exception:
        kind = ""
    single_core_lite = ("v5e" in kind or "v5 lite" in kind
                        or "v6e" in kind or "v6 lite" in kind)
    if single_core_lite:
        # v5e / v6e: 128 MiB physical VMEM, single TensorCore -> big blocks,
        # a single grid step is fine.
        return 96 << 20, False
    # v7x (64 MiB VMEM, 2 TensorCores) or unknown: conservative budget and
    # prefer >= 2 grid steps so both cores get work.
    return 48 << 20, True


def wsd_forward_pallas(X, W_A, W_O, E_y, gamma, beta, *, tb=None):
    """X: [B, N, D] gathered embeddings.  Returns (y_logits [B,N,Y], A [B,N,N])."""
    B, N, D = X.shape
    Y = E_y.shape[0]
    Y_pad = _round_up(Y, 128)
    N_pad = _round_up(N, 128)

    # ---- wrapper-side layout plumbing (no extra compute in the hot loop) ----
    Xb = X.astype(jnp.bfloat16)                                       # (B,N,D)
    W_AO = jnp.concatenate([W_A, W_O], axis=1).astype(jnp.bfloat16)   # (D,2D)
    Ey_pad = jnp.zeros((Y_pad, D), E_y.dtype).at[:Y, :].set(E_y)
    Ey_t = Ey_pad.T.astype(jnp.bfloat16)                              # (D,Y_pad)
    g2 = gamma.reshape(1, D).astype(jnp.float32)
    b2 = beta.reshape(1, D).astype(jnp.float32)

    # ---- batch-tile selection against a real per-step VMEM footprint ----
    budget, prefer_two_steps = _vmem_budget_and_steps_pref()

    def footprint(t):
        bn = t * N
        blocks = 2 * (bn * D * 2            # X block (bf16), double-buffered
                      + D * 2 * D * 2       # W_AO (bf16)
                      + D * Y_pad * 2       # E_y^T (bf16)
                      + 2 * D * 4           # gamma, beta (f32)
                      + bn * Y_pad * 4      # y out block (f32)
                      + bn * N_pad * 4)     # A out block (f32)
        inter = (bn * 2 * D * 4 + bn * 2 * D * 2      # qwxo f32 + bf16 qw/xo
                 + 3 * bn * N * 4 + bn * N * 2        # logits/e/a + bf16 a
                 + 3 * bn * D * 4 + bn * D * 2        # qc/h/hn + bf16 hn
                 + bn * Y_pad * 4 + bn * N_pad * 4)   # y + padded A values
        return blocks + (inter * 3) // 2              # 1.5x slack for relayouts

    def largest_divisor_leq(cap):
        t = max(1, min(B, cap))
        while B % t != 0:
            t -= 1
        return t

    if tb is None:
        tb = B
        if prefer_two_steps and B > 1:
            tb = largest_divisor_leq(B // 2)          # >= 2 steps for 2-TC chips
        while tb > 1 and footprint(tb) > budget:
            tb = largest_divisor_leq(tb - 1)
    assert B % tb == 0
    steps = B // tb

    out_shapes = (
        jax.ShapeDtypeStruct((B, N, Y_pad), jnp.float32),
        jax.ShapeDtypeStruct((B, N, N_pad), jnp.float32),
    )
    grid_spec = pltpu.PrefetchScalarGridSpec(
        num_scalar_prefetch=0,
        grid=(steps,),
        in_specs=[
            pl.BlockSpec((tb, N, D), lambda i: (i, 0, 0)),       # X
            pl.BlockSpec((D, 2 * D), lambda i: (0, 0)),          # W_A | W_O
            pl.BlockSpec((D, Y_pad), lambda i: (0, 0)),          # E_y^T (padded)
            pl.BlockSpec((1, D), lambda i: (0, 0)),              # gamma
            pl.BlockSpec((1, D), lambda i: (0, 0)),              # beta
        ],
        out_specs=[
            pl.BlockSpec((tb, N, Y_pad), lambda i: (i, 0, 0)),   # y_logits (padded)
            pl.BlockSpec((tb, N, N_pad), lambda i: (i, 0, 0)),   # A (padded)
        ],
    )
    cost = pl.CostEstimate(
        flops=B * (4 * N * D * D + 4 * N * N * D + 2 * N * D * Y_pad),
        transcendentals=B * N * (N + 2),
        bytes_accessed=(Xb.size * 2 + W_AO.size * 2 + Ey_t.size * 2
                        + (g2.size + b2.size) * 4
                        + B * N * Y_pad * 4 + B * N * N_pad * 4),
    )
    y_padded, a_padded = pl.pallas_call(
        wsd_kernel,
        out_shape=out_shapes,
        grid_spec=grid_spec,
        cost_estimate=cost,
        compiler_params=pltpu.CompilerParams(
            dimension_semantics=("parallel",),
            vmem_limit_bytes=budget),
    )(Xb, W_AO, Ey_t, g2, b2)

    y_logits = y_padded[:, :, :Y]
    A = a_padded[:, :, :N]
    return y_logits, A


def wsd_forward_reference(X, W_A, W_O, E_y, gamma, beta):
    logits = jnp.einsum("bnd,de,bme->bnm", X, W_A, X)
    A = jax.nn.softmax(logits, axis=-1)
    Qc = jnp.einsum("bnm,bmd,de->bne", A, X, W_O)
    H = Qc + X
    mu = jnp.mean(H, axis=-1, keepdims=True)
    var = jnp.mean((H - mu) ** 2, axis=-1, keepdims=True)
    Hn = (H - mu) / jnp.sqrt(var + 1e-5) * gamma + beta
    y = jnp.einsum("bnd,yd->bny", Hn, E_y)
    return y, A


if __name__ == "__main__":
    # Small shapes consistent with the module's forward.
    B, N, D = 2, 8, 128
    V, Y = 32, 16

    key = jax.random.PRNGKey(0)
    k_ev, k_ey, k_wa, k_wo, k_ms = jax.random.split(key, 5)

    # kaiming_uniform(a=sqrt(5)) on a [*, D] weight -> bound = 1/sqrt(D)
    bound = 1.0 / jnp.sqrt(jnp.float32(D))
    E_v = jax.random.uniform(k_ev, (V, D), jnp.float32, -bound, bound)
    E_y = jax.random.uniform(k_ey, (Y, D), jnp.float32, -bound, bound)
    # padding_idx = 0 rows zeroed (nn.Embedding padding_idx behaviour)
    E_v = E_v.at[0].set(0.0)
    E_y = E_y.at[0].set(0.0)
    W_A = jax.random.uniform(k_wa, (D, D), jnp.float32, -bound, bound)
    W_O = jax.random.uniform(k_wo, (D, D), jnp.float32, -bound, bound)
    gamma = jnp.ones((D,), jnp.float32)   # LayerNorm weight
    beta = jnp.zeros((D,), jnp.float32)   # LayerNorm bias

    # Token ids [B, N] (avoid pad id; mask unused since use_padding=False)
    M_s = jax.random.randint(k_ms, (B, N), 1, V)

    # Glue: embedding gather + (eval-mode) dropout = identity
    X = E_v[M_s]                                        # [B, N, D]

    y_logits, A = wsd_forward_pallas(X, W_A, W_O, E_y, gamma, beta)
    jax.block_until_ready((y_logits, A))

    y_ref, A_ref = wsd_forward_reference(X, W_A, W_O, E_y, gamma, beta)
    assert y_logits.shape == (B, N, Y) and A.shape == (B, N, N)
    assert jnp.allclose(y_logits, y_ref, rtol=2e-2, atol=2e-2)
    assert jnp.allclose(A, A_ref, rtol=2e-2, atol=2e-2)

    print("KERNEL_OK")
</pallas_src>

<mosaic_0001>
module attributes {stable_mosaic.version = 11 : i64} {
  func.func @wsd_kernel(%arg0: i32, %arg1: memref<1x8x128xbf16, #tpu.memory_space<vmem>>, %arg2: memref<128x256xbf16, #tpu.memory_space<vmem>>, %arg3: memref<128x128xbf16, #tpu.memory_space<vmem>>, %arg4: memref<1x128xf32, #tpu.memory_space<vmem>>, %arg5: memref<1x128xf32, #tpu.memory_space<vmem>>, %arg6: memref<1x8x128xf32, #tpu.memory_space<vmem>>, %arg7: memref<1x8x128xf32, #tpu.memory_space<vmem>>) attributes {dimension_semantics = [#tpu.dimension_semantics<parallel>], iteration_bounds = array<i64: 2>, scalar_prefetch = 0 : i64, scratch_operands = 0 : i64, tpu.core_type = #tpu.core_type<tc>, window_params = [{transform_indices = @transform_0, window_bounds = array<i64: 1, 8, 128>}, {pipeline_mode = #tpu.pipeline_mode<synchronous>, transform_indices = @transform_1, window_bounds = array<i64: 128, 256>}, {pipeline_mode = #tpu.pipeline_mode<synchronous>, transform_indices = @transform_2, window_bounds = array<i64: 128, 128>}, {pipeline_mode = #tpu.pipeline_mode<synchronous>, transform_indices = @transform_3, window_bounds = array<i64: 1, 128>}, {pipeline_mode = #tpu.pipeline_mode<synchronous>, transform_indices = @transform_4, window_bounds = array<i64: 1, 128>}, {transform_indices = @transform_5, window_bounds = array<i64: 1, 8, 128>}, {transform_indices = @transform_6, window_bounds = array<i64: 1, 8, 128>}]} {
    %c0 = arith.constant 0 : index
    %c0_0 = arith.constant 0 : index
    %c0_1 = arith.constant 0 : index
    %0 = vector.load %arg1[%c0, %c0_0, %c0_1] : memref<1x8x128xbf16, #tpu.memory_space<vmem>>, vector<1x8x128xbf16>
    %1 = vector.shape_cast %0 : vector<1x8x128xbf16> to vector<8x128xbf16>
    %c0_2 = arith.constant 0 : index
    %c0_3 = arith.constant 0 : index
    %2 = vector.load %arg2[%c0_2, %c0_3] : memref<128x256xbf16, #tpu.memory_space<vmem>>, vector<128x256xbf16>
    %cst = arith.constant dense<0.000000e+00> : vector<8x256xf32>
    %3 = tpu.matmul %1, %2, %cst {dimension_numbers = #tpu.dot_dimension_numbers<[1], [0], [0], [1], [0, 0, 1, 1], [], []>} : vector<8x128xbf16>, vector<128x256xbf16>, vector<8x256xf32> -> vector<8x256xf32>
    %4 = vector.extract_strided_slice %3 {offsets = [0, 0], sizes = [8, 128], strides = [1, 1]} : vector<8x256xf32> to vector<8x128xf32>
    %5 = vector.shape_cast %4 : vector<8x128xf32> to vector<1x8x128xf32>
    %6 = arith.truncf %5 : vector<1x8x128xf32> to vector<1x8x128xbf16>
    %7 = vector.extract_strided_slice %3 {offsets = [0, 128], sizes = [8, 128], strides = [1, 1]} : vector<8x256xf32> to vector<8x128xf32>
    %8 = vector.shape_cast %7 : vector<8x128xf32> to vector<1x8x128xf32>
    %9 = arith.truncf %8 : vector<1x8x128xf32> to vector<1x8x128xbf16>
    "tpu.trace_start"() <{level = 10 : i32, message = "bnd,bmd->bnm"}> : () -> ()
    %cst_4 = arith.constant dense<0.000000e+00> : vector<1x8x8xf32>
    %10 = tpu.matmul %6, %0, %cst_4 {dimension_numbers = #tpu.dot_dimension_numbers<[2], [2], [1], [1], [0, 0, 0, 1, 1, 1], [0], [0]>} : vector<1x8x128xbf16>, vector<1x8x128xbf16>, vector<1x8x8xf32> -> vector<1x8x8xf32>
    "tpu.trace_stop"() : () -> ()
    %cst_5 = arith.constant dense<0xFF800000> : vector<1x8xf32>
    %11 = vector.multi_reduction <maximumf>, %10, %cst_5 [2] : vector<1x8x8xf32> to vector<1x8xf32>
    %12 = vector.shape_cast %11 : vector<1x8xf32> to vector<1x8x1xf32>
    %13 = vector.broadcast %12 : vector<1x8x1xf32> to vector<1x8x8xf32>
    %14 = arith.subf %10, %13 : vector<1x8x8xf32>
    %15 = math.exp %14 : vector<1x8x8xf32>
    %cst_6 = arith.constant dense<0.000000e+00> : vector<1x8xf32>
    %16 = vector.multi_reduction <add>, %15, %cst_6 [2] : vector<1x8x8xf32> to vector<1x8xf32>
    %17 = vector.shape_cast %16 : vector<1x8xf32> to vector<1x8x1xf32>
    %18 = tpu.reciprocal %17 {approx = true} : vector<1x8x1xf32> -> vector<1x8x1xf32>
    %19 = vector.broadcast %18 : vector<1x8x1xf32> to vector<1x8x8xf32>
    %20 = arith.mulf %15, %19 : vector<1x8x8xf32>
    %21 = arith.truncf %20 : vector<1x8x8xf32> to vector<1x8x8xbf16>
    "tpu.trace_start"() <{level = 10 : i32, message = "bnm,bmd->bnd"}> : () -> ()
    %cst_7 = arith.constant dense<0.000000e+00> : vector<1x8x128xf32>
    %22 = tpu.matmul %21, %9, %cst_7 {dimension_numbers = #tpu.dot_dimension_numbers<[2], [1], [1], [2], [0, 0, 0, 1, 1, 2], [0], [0]>} : vector<1x8x8xbf16>, vector<1x8x128xbf16>, vector<1x8x128xf32> -> vector<1x8x128xf32>
    "tpu.trace_stop"() : () -> ()
    %23 = arith.extf %0 : vector<1x8x128xbf16> to vector<1x8x128xf32>
    %24 = arith.addf %22, %23 : vector<1x8x128xf32>
    %25 = vector.shape_cast %24 : vector<1x8x128xf32> to vector<8x128xf32>
    %cst_8 = arith.constant dense<0.000000e+00> : vector<8xf32>
    %26 = vector.multi_reduction <add>, %25, %cst_8 [1] : vector<8x128xf32> to vector<8xf32>
    %27 = vector.shape_cast %26 : vector<8xf32> to vector<8x1xf32>
    %cst_9 = arith.constant 1.280000e+02 : f32
    %28 = vector.broadcast %cst_9 : f32 to vector<8x1xf32>
    %29 = arith.divf %27, %28 : vector<8x1xf32>
    %30 = vector.broadcast %29 : vector<8x1xf32> to vector<8x128xf32>
    %31 = arith.subf %25, %30 : vector<8x128xf32>
    %32 = arith.mulf %31, %31 : vector<8x128xf32>
    %cst_10 = arith.constant dense<0.000000e+00> : vector<8xf32>
    %33 = vector.multi_reduction <add>, %32, %cst_10 [1] : vector<8x128xf32> to vector<8xf32>
    %34 = vector.shape_cast %33 : vector<8xf32> to vector<8x1xf32>
    %cst_11 = arith.constant 1.280000e+02 : f32
    %35 = vector.broadcast %cst_11 : f32 to vector<8x1xf32>
    %36 = arith.divf %34, %35 : vector<8x1xf32>
    %37 = vector.broadcast %29 : vector<8x1xf32> to vector<8x128xf32>
    %38 = arith.subf %25, %37 : vector<8x128xf32>
    %cst_12 = arith.constant 9.99999974E-6 : f32
    %39 = vector.broadcast %cst_12 : f32 to vector<8x1xf32>
    %40 = arith.addf %36, %39 : vector<8x1xf32>
    %41 = math.rsqrt %40 : vector<8x1xf32>
    %42 = vector.broadcast %41 : vector<8x1xf32> to vector<8x128xf32>
    %43 = arith.mulf %38, %42 : vector<8x128xf32>
    %c0_13 = arith.constant 0 : index
    %c0_14 = arith.constant 0 : index
    %44 = vector.load %arg4[%c0_13, %c0_14] : memref<1x128xf32, #tpu.memory_space<vmem>>, vector<1x128xf32>
    %45 = vector.broadcast %44 : vector<1x128xf32> to vector<8x128xf32>
    %46 = arith.mulf %43, %45 : vector<8x128xf32>
    %c0_15 = arith.constant 0 : index
    %c0_16 = arith.constant 0 : index
    %47 = vector.load %arg5[%c0_15, %c0_16] : memref<1x128xf32, #tpu.memory_space<vmem>>, vector<1x128xf32>
    %48 = vector.broadcast %47 : vector<1x128xf32> to vector<8x128xf32>
    %49 = arith.addf %46, %48 : vector<8x128xf32>
    %50 = arith.truncf %49 : vector<8x128xf32> to vector<8x128xbf16>
    %c0_17 = arith.constant 0 : index
    %c0_18 = arith.constant 0 : index
    %51 = vector.load %arg3[%c0_17, %c0_18] : memref<128x128xbf16, #tpu.memory_space<vmem>>, vector<128x128xbf16>
    %cst_19 = arith.constant dense<0.000000e+00> : vector<8x128xf32>
    %52 = tpu.matmul %50, %51, %cst_19 {dimension_numbers = #tpu.dot_dimension_numbers<[1], [0], [0], [1], [0, 0, 1, 1], [], []>} : vector<8x128xbf16>, vector<128x128xbf16>, vector<8x128xf32> -> vector<8x128xf32>
    %53 = vector.shape_cast %52 : vector<8x128xf32> to vector<1x8x128xf32>
    %c0_20 = arith.constant 0 : index
    %c0_21 = arith.constant 0 : index
    %c0_22 = arith.constant 0 : index
    %54 = vector.load %arg6[%c0_20, %c0_21, %c0_22] : memref<1x8x128xf32, #tpu.memory_space<vmem>>, vector<1x8x128xf32>
    tpu.vector_store %arg6[%c0_20, %c0_21, %c0_22], %53 {strides = array<i32>} : memref<1x8x128xf32, #tpu.memory_space<vmem>>, vector<1x8x128xf32>,
    %cst_23 = arith.constant 0.000000e+00 : f32
    %55 = vector.broadcast %cst_23 : f32 to vector<1x8x120xf32>
    %56 = tpu.concatenate %20, %55 in 2 : vector<1x8x8xf32>, vector<1x8x120xf32> -> vector<1x8x128xf32>
    %c0_24 = arith.constant 0 : index
    %c0_25 = arith.constant 0 : index
    %c0_26 = arith.constant 0 : index
    %57 = vector.load %arg7[%c0_24, %c0_25, %c0_26] : memref<1x8x128xf32, #tpu.memory_space<vmem>>, vector<1x8x128xf32>
    tpu.vector_store %arg7[%c0_24, %c0_25, %c0_26], %56 {strides = array<i32>} : memref<1x8x128xf32, #tpu.memory_space<vmem>>, vector<1x8x128xf32>,
    return
  }
  func.func @transform_0(%arg0: i32) -> (i32, i32, i32) {
    %c0_i32 = arith.constant 0 : i32
    %c0_i32_0 = arith.constant 0 : i32
    %c0_i32_1 = arith.constant 0 : i32
    return %arg0, %c0_i32, %c0_i32_0 : i32, i32, i32
  }
  func.func @transform_1(%arg0: i32) -> (i32, i32) {
    %c0_i32 = arith.constant 0 : i32
    %c0_i32_0 = arith.constant 0 : i32
    %c0_i32_1 = arith.constant 0 : i32
    return %c0_i32, %c0_i32_0 : i32, i32
  }
  func.func @transform_2(%arg0: i32) -> (i32, i32) {
    %c0_i32 = arith.constant 0 : i32
    %c0_i32_0 = arith.constant 0 : i32
    %c0_i32_1 = arith.constant 0 : i32
    return %c0_i32, %c0_i32_0 : i32, i32
  }
  func.func @transform_3(%arg0: i32) -> (i32, i32) {
    %c0_i32 = arith.constant 0 : i32
    %c0_i32_0 = arith.constant 0 : i32
    %c0_i32_1 = arith.constant 0 : i32
    return %c0_i32, %c0_i32_0 : i32, i32
  }
  func.func @transform_4(%arg0: i32) -> (i32, i32) {
    %c0_i32 = arith.constant 0 : i32
    %c0_i32_0 = arith.constant 0 : i32
    %c0_i32_1 = arith.constant 0 : i32
    return %c0_i32, %c0_i32_0 : i32, i32
  }
  func.func @transform_5(%arg0: i32) -> (i32, i32, i32) {
    %c0_i32 = arith.constant 0 : i32
    %c0_i32_0 = arith.constant 0 : i32
    %c0_i32_1 = arith.constant 0 : i32
    return %arg0, %c0_i32, %c0_i32_0 : i32, i32, i32
  }
  func.func @transform_6(%arg0: i32) -> (i32, i32, i32) {
    %c0_i32 = arith.constant 0 : i32
    %c0_i32_0 = arith.constant 0 : i32
    %c0_i32_1 = arith.constant 0 : i32
    return %arg0, %c0_i32, %c0_i32_0 : i32, i32, i32
  }
}

</mosaic_0001>

<llo_original>
// kernel: tpu_custom_call.1
$region0: #{tpu_custom_call.1}
  #allocation0 [shape = 'u32[]', space=smem, size = 0x4, offset = 0x4, fixed_abs, tag = 'smem constant byte address 0x4 - core index']
  #allocation1 [shape = 'u32[144,128]{1,0:T(1,128)}', space=vmem, size = 0x12000, scoped, tag = 'internal scratch']
  %s0 = inlined_call_operand.hbm [shape: bf16[2,8,128], index: 0, kind: input, shape index: {}]
  %s1 = inlined_call_operand.hbm [shape: bf16[128,256], index: 1, kind: input, shape index: {}]
  %s2 = inlined_call_operand.hbm [shape: bf16[128,128], index: 2, kind: input, shape index: {}]
  %s3 = inlined_call_operand.vmem [shape: f32[1,128], index: 3, kind: input, shape index: {}]
  %s4 = inlined_call_operand.vmem [shape: f32[1,128], index: 4, kind: input, shape index: {}]
  %s5 = inlined_call_operand.hbm [shape: f32[2,8,128], index: 5, kind: output, shape index: {0}]
  %s6 = inlined_call_operand.hbm [shape: f32[2,8,128], index: 6, kind: output, shape index: {1}]
  %7 = xla_tuple %s5, %s6
  %s8 = sld [smem:[#allocation0]]
  $region73: #{tpu_custom_call.1} parent=0
    _
  %s10 = ssub.s32 1, %s8
  %s11 = scalar_select 0, %s10, %s8
  $region1: #{tpu_custom_call.1} parent=0
    #allocation2 [shape = 'u8[4096]{0}', space=vmem, size = 0x1000, scoped, tag = 'input window, operand 0']
    #allocation3 [shape = 's32[2]{0}', space=sflag, size = 0x8, scoped, tag = 'scoped memory for tpu_custom_call.1']
    #allocation4 [shape = 's32[2]{0}', space=sflag, size = 0x8, scoped, tag = 'scoped memory for tpu_custom_call.1']
    #allocation5 [shape = 'u8[65536]{0}', space=vmem, size = 0x10000, scoped, tag = 'input window, operand 1, single buffered']
    #allocation6 [shape = 's32[1]{0}', space=sflag, size = 0x4, scoped, tag = 'scoped memory for tpu_custom_call.1']
    #allocation7 [shape = 'u8[32768]{0}', space=vmem, size = 0x8000, scoped, tag = 'input window, operand 2, single buffered']
    #allocation8 [shape = 'u8[8192]{0}', space=vmem, size = 0x2000, scoped, tag = 'output window, operand 0']
    #allocation9 [shape = 'u8[8192]{0}', space=vmem, size = 0x2000, scoped, tag = 'output window, operand 1']
    #allocation10 [shape = 's32[2]{0}', space=sflag, size = 0x8, scoped, tag = 'scoped memory for tpu_custom_call.1']
    %12 = vsyncpa [#allocation3], 0
    %s13 = scalar_lea.sflag [#allocation3], 1
    %14 = vsyncpa %s13, 0
    %15 = vsyncpa [#allocation6], 0
    %16 = vsyncpa [#allocation4], 0
    %s17 = scalar_lea.sflag [#allocation4], 1
    %18 = vsyncpa %s17, 0
    %19 = vsyncpa [#allocation10], 0
    %s20 = scalar_lea.sflag [#allocation10], 1
    %21 = vsyncpa %s20, 0
    loop: start=0, step=1, limit=4
    $region2: #{tpu_custom_call.1} parent=1 // loop_pre_header
      _
    $region3: #{tpu_custom_call.1} parent=1 // loop_header
      %s23 = sphi 0, %s27
      %p24 = scmp.ge.s32.totalorder %s23, 4
      %s33 = sphi 0, %s35
      %s36 = sphi 0, %s33
      %s37 = sphi 0, %s36
      %s53 = sphi 0, %s37
      %s57 = sphi 0, %s57
      %s59 = sphi 0, %s57
      %s60 = sphi 0, %s59
      %s74 = sphi 0, %s60
      %s78 = sphi 0, %s78
      %s80 = sphi 0, %s78
      %s81 = sphi 0, %s80
      %s95 = sphi 0, %s81
      %s99 = sphi 0, %s99
      %s101 = sphi 0, %s99
      %s102 = sphi 0, %s101
      %s116 = sphi 0, %s102
      %s120 = sphi 0, %s120
      %s122 = sphi 0, %s120
      %s123 = sphi 0, %s122
      %s137 = sphi 0, %s123
      %s143 = sphi 0, %s145
      %s146 = sphi 0, %s143
      %s147 = sphi 0, %s146
      %s163 = sphi 0, %s147
      %s169 = sphi 0, %s171
      %s172 = sphi 0, %s169
      %s173 = sphi 0, %s172
      %s189 = sphi 0, %s173
    $region4: #{tpu_custom_call.1} parent=1 // loop_header_branch
      %26 = sbr.rel (%p24) target = $region8
    $region5: #{tpu_custom_call.1} parent=1 // loop_body
      %s28 = ssub.s32 %s23, 1
      %s29 = ssub.s32 %s23, 2
      %s30 = sadd.s32 %s23, 1
      %s31 = ssub.s32 %s23, %s30
      %p32 = scmp.eq.s32.totalorder %s31, 0
      %s34 = sadd.s32 %s33, 1
      %s35 = scalar_select %p32, %s33, %s34
      %p38 = pneg %p32
      %p39 = scmp.eq.s32.totalorder %s23, 1
      %p40 = por %p38, %p39
      %p41 = scmp.ne.s32.totalorder %s33, %s36
      %p42 = scmp.eq.s32.totalorder %s23, 0
      %p43 = por %p41, %p42
      %p44 = scmp.ne.s32.totalorder %s33, %s36
      %p45 = scmp.eq.s32.totalorder %s28, 1
      %p46 = por %p44, %p45
      %p47 = scmp.ne.s32.totalorder %s36, %s37
      %p48 = scmp.eq.s32.totalorder %s28, 0
      %p49 = por %p47, %p48
      %p50 = scmp.ne.s32.totalorder %s36, %s37
      %p51 = scmp.eq.s32.totalorder %s29, 1
      %p52 = por %p50, %p51
      %p54 = scmp.ne.s32.totalorder %s37, %s53
      %p55 = scmp.eq.s32.totalorder %s29, 0
      %p56 = por %p54, %p55
      %s58 = sadd.s32 %s57, 1
      %p61 = scmp.eq.s32.totalorder %s23, 1
      %p62 = scmp.ne.s32.totalorder %s57, %s59
      %p63 = scmp.eq.s32.totalorder %s23, 0
      %p64 = por %p62, %p63
      %p65 = scmp.ne.s32.totalorder %s57, %s59
      %p66 = scmp.eq.s32.totalorder %s28, 1
      %p67 = por %p65, %p66
      %p68 = scmp.ne.s32.totalorder %s59, %s60
      %p69 = scmp.eq.s32.totalorder %s28, 0
      %p70 = por %p68, %p69
      %p71 = scmp.ne.s32.totalorder %s59, %s60
      %p72 = scmp.eq.s32.totalorder %s29, 1
      %p73 = por %p71, %p72
      %p75 = scmp.ne.s32.totalorder %s60, %s74
      %p76 = scmp.eq.s32.totalorder %s29, 0
      %p77 = por %p75, %p76
      %s79 = sadd.s32 %s78, 1
      %p82 = scmp.eq.s32.totalorder %s23, 1
      %p83 = scmp.ne.s32.totalorder %s78, %s80
      %p84 = scmp.eq.s32.totalorder %s23, 0
      %p85 = por %p83, %p84
      %p86 = scmp.ne.s32.totalorder %s78, %s80
      %p87 = scmp.eq.s32.totalorder %s28, 1
      %p88 = por %p86, %p87
      %p89 = scmp.ne.s32.totalorder %s80, %s81
      %p90 = scmp.eq.s32.totalorder %s28, 0
      %p91 = por %p89, %p90
      %p92 = scmp.ne.s32.totalorder %s80, %s81
      %p93 = scmp.eq.s32.totalorder %s29, 1
      %p94 = por %p92, %p93
      %p96 = scmp.ne.s32.totalorder %s81, %s95
      %p97 = scmp.eq.s32.totalorder %s29, 0
      %p98 = por %p96, %p97
      %s100 = sadd.s32 %s99, 1
      %p103 = scmp.eq.s32.totalorder %s23, 1
      %p104 = scmp.ne.s32.totalorder %s99, %s101
      %p105 = scmp.eq.s32.totalorder %s23, 0
      %p106 = por %p104, %p105
      %p107 = scmp.ne.s32.totalorder %s99, %s101
      %p108 = scmp.eq.s32.totalorder %s28, 1
      %p109 = por %p107, %p108
      %p110 = scmp.ne.s32.totalorder %s101, %s102
      %p111 = scmp.eq.s32.totalorder %s28, 0
      %p112 = por %p110, %p111
      %p113 = scmp.ne.s32.totalorder %s101, %s102
      %p114 = scmp.eq.s32.totalorder %s29, 1
      %p115 = por %p113, %p114
      %p117 = scmp.ne.s32.totalorder %s102, %s116
      %p118 = scmp.eq.s32.totalorder %s29, 0
      %p119 = por %p117, %p118
      %s121 = sadd.s32 %s120, 1
      %p124 = scmp.eq.s32.totalorder %s23, 1
      %p125 = scmp.ne.s32.totalorder %s120, %s122
      %p126 = scmp.eq.s32.totalorder %s23, 0
      %p127 = por %p125, %p126
      %p128 = scmp.ne.s32.totalorder %s120, %s122
      %p129 = scmp.eq.s32.totalorder %s28, 1
      %p130 = por %p128, %p129
      %p131 = scmp.ne.s32.totalorder %s122, %s123
      %p132 = scmp.eq.s32.totalorder %s28, 0
      %p133 = por %p131, %p132
      %p134 = scmp.ne.s32.totalorder %s122, %s123
      %p135 = scmp.eq.s32.totalorder %s29, 1
      %p136 = por %p134, %p135
      %p138 = scmp.ne.s32.totalorder %s123, %s137
      %p139 = scmp.eq.s32.totalorder %s29, 0
      %p140 = por %p138, %p139
      %s141 = ssub.s32 %s23, %s30
      %p142 = scmp.eq.s32.totalorder %s141, 0
      %s144 = sadd.s32 %s143, 1
      %s145 = scalar_select %p142, %s143, %s144
      %p148 = pneg %p142
      %p149 = scmp.eq.s32.totalorder %s23, 1
      %p150 = por %p148, %p149
      %p151 = scmp.ne.s32.totalorder %s143, %s146
      %p152 = scmp.eq.s32.totalorder %s23, 0
      %p153 = por %p151, %p152
      %p154 = scmp.ne.s32.totalorder %s143, %s146
      %p155 = scmp.eq.s32.totalorder %s28, 1
      %p156 = por %p154, %p155
      %p157 = scmp.ne.s32.totalorder %s146, %s147
      %p158 = scmp.eq.s32.totalorder %s28, 0
      %p159 = por %p157, %p158
      %p160 = scmp.ne.s32.totalorder %s146, %s147
      %p161 = scmp.eq.s32.totalorder %s29, 1
      %p162 = por %p160, %p161
      %p164 = scmp.ne.s32.totalorder %s147, %s163
      %p165 = scmp.eq.s32.totalorder %s29, 0
      %p166 = por %p164, %p165
      %s167 = ssub.s32 %s23, %s30
      %p168 = scmp.eq.s32.totalorder %s167, 0
      %s170 = sadd.s32 %s169, 1
      %s171 = scalar_select %p168, %s169, %s170
      %p174 = pneg %p168
      %p175 = scmp.eq.s32.totalorder %s23, 1
      %p176 = por %p174, %p175
      %p177 = scmp.ne.s32.totalorder %s169, %s172
      %p178 = scmp.eq.s32.totalorder %s23, 0
      %p179 = por %p177, %p178
      %p180 = scmp.ne.s32.totalorder %s169, %s172
      %p181 = scmp.eq.s32.totalorder %s28, 1
      %p182 = por %p180, %p181
      %p183 = scmp.ne.s32.totalorder %s172, %s173
      %p184 = scmp.eq.s32.totalorder %s28, 0
      %p185 = por %p183, %p184
      %p186 = scmp.ne.s32.totalorder %s172, %s173
      %p187 = scmp.eq.s32.totalorder %s29, 1
      %p188 = por %p186, %p187
      %p190 = scmp.ne.s32.totalorder %s173, %s189
      %p191 = scmp.eq.s32.totalorder %s29, 0
      %p192 = por %p190, %p191
      %p193 = scmp.le.s32.totalorder 1, %s23
      %p194 = scmp.lt.s32.totalorder %s23, 3
      %p195 = pnand %p193, %p194
      %p196 = pneg %p195
      // Predicated region
      $region9: #{tpu_custom_call.1} parent=5 // pred_check
        _
      $region10: #{tpu_custom_call.1} parent=5 // pred_check_branch
        %198 = sbr.rel (%p195) target = $region12
      $region11: #{tpu_custom_call.1} parent=5 // pred_region
        %s199 = ssub.s32 %s23, 1
        // Predicated region
        $region13: #{tpu_custom_call.1} parent=11 // pred_check
          %p200 = pneg %p70
        $region14: #{tpu_custom_call.1} parent=11 // pred_check_branch
          %202 = sbr.rel (%p200) target = $region16
        $region15: #{tpu_custom_call.1} parent=11 // pred_region
          %s204 = ssub.s32 2048, 2048
          %205 = vsyncadd [#allocation6], %s204
          %s206 = sshll.u32 [#allocation5], 4
          %s207 = int_to_ptr.vmem [resolvable:$true] %s206
          %212 = dma.hbm_to_vmem [thread:$0]  %s1, 2048, %s207, [#allocation6], 128, 128, 8
        $region16: #{tpu_custom_call.1} parent=11 // pred_fallthru
          _
        // Predicated region
        $region17: #{tpu_custom_call.1} parent=11 // pred_check
          %p213 = pneg %p91
        $region18: #{tpu_custom_call.1} parent=11 // pred_check_branch
          %215 = sbr.rel (%p213) target = $region20
        $region19: #{tpu_custom_call.1} parent=11 // pred_region
          %s217 = ssub.s32 1024, 1024
          %218 = vsyncadd [#allocation6], %s217
          %s219 = sshll.u32 [#allocation7], 4
          %s220 = int_to_ptr.vmem [resolvable:$true] %s219
          %225 = dma.hbm_to_vmem [thread:$0]  %s2, 1024, %s220, [#allocation6], 64, 64, 4
        $region20: #{tpu_custom_call.1} parent=11 // pred_fallthru
          _
        // Predicated region
        $region21: #{tpu_custom_call.1} parent=11 // pred_check
          %p226 = pneg %p112
        $region22: #{tpu_custom_call.1} parent=11 // pred_check_branch
          %228 = sbr.rel (%p226) target = $region24
        $region23: #{tpu_custom_call.1} parent=11 // pred_region
          _
        $region24: #{tpu_custom_call.1} parent=11 // pred_fallthru
          _
        // Predicated region
        $region25: #{tpu_custom_call.1} parent=11 // pred_check
          %p229 = pneg %p133
        $region26: #{tpu_custom_call.1} parent=11 // pred_check_branch
          %231 = sbr.rel (%p229) target = $region28
        $region27: #{tpu_custom_call.1} parent=11 // pred_region
          _
        $region28: #{tpu_custom_call.1} parent=11 // pred_fallthru
          _
      $region12: #{tpu_custom_call.1} parent=5 // pred_fallthru
        _
      %p232 = scmp.lt.s32.totalorder %s23, 2
      // Predicated region
      $region29: #{tpu_custom_call.1} parent=5 // pred_check
        %p233 = pneg %p232
      $region30: #{tpu_custom_call.1} parent=5 // pred_check_branch
        %235 = sbr.rel (%p233) target = $region32
      $region31: #{tpu_custom_call.1} parent=5 // pred_region
        // Predicated region
        $region33: #{tpu_custom_call.1} parent=31 // pred_check
          %p236 = pneg %p43
        $region34: #{tpu_custom_call.1} parent=31 // pred_check_branch
          %238 = sbr.rel (%p236) target = $region36
        $region35: #{tpu_custom_call.1} parent=31 // pred_region
          %s239 = sand.u32 %s33, 1
          %s240 = scalar_lea.sflag [#allocation3], %s239
          %s241 = sand.u32 %s33, 1
          %s242 = smul.addr %s241, 4
          %s243 = scalar_lea.vmem [#allocation2], %s242
          %s245 = ssub.s32 64, 64
          %246 = vsyncadd %s240, %s245
          %s247 = smul.addr %s23, 64
          %s248 = scalar_lea.hbm %s0, %s247
          %s250 = sshll.u32 %s243, 4
          %s251 = int_to_ptr.vmem [resolvable:$true] %s250
          %253 = dma.hbm_to_vmem [thread:$0]  %s248, 64, %s251, %s240
        $region36: #{tpu_custom_call.1} parent=31 // pred_fallthru
          _
      $region32: #{tpu_custom_call.1} parent=5 // pred_fallthru
        _
      %p254 = scmp.le.s32.totalorder 1, %s23
      %p255 = scmp.lt.s32.totalorder %s23, 3
      %p256 = pnand %p254, %p255
      %p257 = pneg %p256
      // Predicated region
      $region37: #{tpu_custom_call.1} parent=5 // pred_check
        _
      $region38: #{tpu_custom_call.1} parent=5 // pred_check_branch
        %259 = sbr.rel (%p256) target = $region40
      $region39: #{tpu_custom_call.1} parent=5 // pred_region
        %s260 = ssub.s32 %s23, 1
        %s261 = sand.u32 %s36, 1
        %s262 = scalar_lea.sflag [#allocation3], %s261
        %s263 = sand.u32 %s36, 1
        %s264 = smul.addr %s263, 4
        %s265 = scalar_lea.vmem [#allocation2], %s264
        // Predicated region
        $region41: #{tpu_custom_call.1} parent=39 // pred_check
          %p266 = pneg %p49
        $region42: #{tpu_custom_call.1} parent=39 // pred_check_branch
          %268 = sbr.rel (%p266) target = $region44
        $region43: #{tpu_custom_call.1} parent=39 // pred_region
          %269 = dma.done %s262, 64
        $region44: #{tpu_custom_call.1} parent=39 // pred_fallthru
          _
        // Predicated region
        $region45: #{tpu_custom_call.1} parent=39 // pred_check
          %p270 = pneg %p70
        $region46: #{tpu_custom_call.1} parent=39 // pred_check_branch
          %272 = sbr.rel (%p270) target = $region48
        $region47: #{tpu_custom_call.1} parent=39 // pred_region
          %273 = dma.done [#allocation6], 2048
        $region48: #{tpu_custom_call.1} parent=39 // pred_fallthru
          _
        // Predicated region
        $region49: #{tpu_custom_call.1} parent=39 // pred_check
          %p274 = pneg %p91
        $region50: #{tpu_custom_call.1} parent=39 // pred_check_branch
          %276 = sbr.rel (%p274) target = $region52
        $region51: #{tpu_custom_call.1} parent=39 // pred_region
          %277 = dma.done [#allocation6], 1024
        $region52: #{tpu_custom_call.1} parent=39 // pred_fallthru
          _
        %s278 = sand.u32 %s36, 1
        %s279 = scalar_lea.sflag [#allocation3], %s278
        %s280 = sand.u32 %s36, 1
        %s281 = smul.addr %s280, 4
        %s282 = scalar_lea.vmem [#allocation2], %s281
        %p283 = pneg %p49
        %p284 = pneg %p46
        %p285 = pneg %p70
        %p286 = pneg %p67
        %p287 = pneg %p91
        %p288 = pneg %p88
        %p289 = pneg %p112
        %p290 = pneg %p109
        %p291 = pneg %p133
        %p292 = pneg %p130
        %p293 = pneg %p159
        %p294 = pneg %p156
        %s295 = sand.u32 %s146, 1
        %s296 = scalar_lea.sflag [#allocation4], %s295
        %s297 = sand.u32 %s146, 1
        %s298 = smul.addr %s297, 8
        %s299 = scalar_lea.vmem [#allocation8], %s298
        %p300 = pneg %p185
        %p301 = pneg %p182
        %s302 = sand.u32 %s172, 1
        %s303 = scalar_lea.sflag [#allocation10], %s302
        %s304 = sand.u32 %s172, 1
        %s305 = smul.addr %s304, 8
        %s306 = scalar_lea.vmem [#allocation9], %s305
        %v308 = vld [vmem:[%s265] sm:$0xf]
        %v309 = vld [vmem:[#allocation5] sm:$0xff]
        %v310 = vld [vmem:[#allocation5 + $0x8] sm:$0xff]
        %v311 = vld [vmem:[#allocation5 + $0x10] sm:$0xff]
        %v312 = vld [vmem:[#allocation5 + $0x18] sm:$0xff]
        %v313 = vld [vmem:[#allocation5 + $0x20] sm:$0xff]
        %v314 = vld [vmem:[#allocation5 + $0x28] sm:$0xff]
        %v315 = vld [vmem:[#allocation5 + $0x30] sm:$0xff]
        %v316 = vld [vmem:[#allocation5 + $0x38] sm:$0xff]
        %v317 = vld [vmem:[#allocation5 + $0x40] sm:$0xff]
        %v318 = vld [vmem:[#allocation5 + $0x48] sm:$0xff]
        %v319 = vld [vmem:[#allocation5 + $0x50] sm:$0xff]
        %v320 = vld [vmem:[#allocation5 + $0x58] sm:$0xff]
        %v321 = vld [vmem:[#allocation5 + $0x60] sm:$0xff]
        %v322 = vld [vmem:[#allocation5 + $0x68] sm:$0xff]
        %v323 = vld [vmem:[#allocation5 + $0x70] sm:$0xff]
        %v324 = vld [vmem:[#allocation5 + $0x78] sm:$0xff]
        %v341 = vunpack.c.l.b16 %v309
        %v342 = vunpack.c.h.b16 %v309
        %v343 = vunpack.c.l.b16 %v310
        %v344 = vunpack.c.h.b16 %v310
        %v345 = vunpack.c.l.b16 %v311
        %v346 = vunpack.c.h.b16 %v311
        %v347 = vunpack.c.l.b16 %v312
        %v348 = vunpack.c.h.b16 %v312
        %v349 = vunpack.c.l.b16 %v313
        %v350 = vunpack.c.h.b16 %v313
        %v351 = vunpack.c.l.b16 %v314
        %v352 = vunpack.c.h.b16 %v314
        %v353 = vunpack.c.l.b16 %v315
        %v354 = vunpack.c.h.b16 %v315
        %v355 = vunpack.c.l.b16 %v316
        %v356 = vunpack.c.h.b16 %v316
        %v357 = vunpack.c.l.b16 %v317
        %v358 = vunpack.c.h.b16 %v317
        %v359 = vunpack.c.l.b16 %v318
        %v360 = vunpack.c.h.b16 %v318
        %v361 = vunpack.c.l.b16 %v319
        %v362 = vunpack.c.h.b16 %v319
        %v363 = vunpack.c.l.b16 %v320
        %v364 = vunpack.c.h.b16 %v320
        %v365 = vunpack.c.l.b16 %v321
        %v366 = vunpack.c.h.b16 %v321
        %v367 = vunpack.c.l.b16 %v322
        %v368 = vunpack.c.h.b16 %v322
        %v369 = vunpack.c.l.b16 %v323
        %v370 = vunpack.c.h.b16 %v323
        %v371 = vunpack.c.l.b16 %v324
        %v372 = vunpack.c.h.b16 %v324
        %v373 = vpack.c.b16 %v343, %v341
        %v374 = vpack.c.b16 %v344, %v342
        %v375 = vpack.c.b16 %v347, %v345
        %v376 = vpack.c.b16 %v348, %v346
        %v377 = vpack.c.b16 %v351, %v349
        %v378 = vpack.c.b16 %v352, %v350
        %v379 = vpack.c.b16 %v355, %v353
        %v380 = vpack.c.b16 %v356, %v354
        %v381 = vpack.c.b16 %v359, %v357
        %v382 = vpack.c.b16 %v360, %v358
        %v383 = vpack.c.b16 %v363, %v361
        %v384 = vpack.c.b16 %v364, %v362
        %v385 = vpack.c.b16 %v367, %v365
        %v386 = vpack.c.b16 %v368, %v366
        %v387 = vpack.c.b16 %v371, %v369
        %v388 = vpack.c.b16 %v372, %v370
        %405 = vmatprep.subr.bf16.mxu0 %v374
        %406 = vmatpush1.bf16.msra.mxu0 %v373
        %407 = vmatprep.subr.bf16.mxu0 %v376
        %408 = vmatpush1.bf16.msra.mxu0 %v375
        %409 = vmatprep.subr.bf16.mxu0 %v378
        %410 = vmatpush1.bf16.msra.mxu0 %v377
        %411 = vmatprep.subr.bf16.mxu0 %v380
        %412 = vmatpush1.bf16.msra.mxu0 %v379
        %413 = vmatprep.subr.bf16.mxu0 %v382
        %414 = vmatpush1.bf16.msra.mxu0 %v381
        %415 = vmatprep.subr.bf16.mxu0 %v384
        %416 = vmatpush1.bf16.msra.mxu0 %v383
        %417 = vmatprep.subr.bf16.mxu0 %v386
        %418 = vmatpush1.bf16.msra.mxu0 %v385
        %419 = vmatprep.subr.bf16.mxu0 %v388
        %420 = vmatpush1.bf16.msra.mxu0 %v387
        %421 = vmatprep.subr.bf16.mxu0 0
        %422 = vmatpush1.bf16.msra.mxu0 0
        %423 = vmatprep.subr.bf16.mxu0 0
        %424 = vmatpush1.bf16.msra.mxu0 0
        %425 = vmatprep.subr.bf16.mxu0 0
        %426 = vmatpush1.bf16.msra.mxu0 0
        %427 = vmatprep.subr.bf16.mxu0 0
        %428 = vmatpush1.bf16.msra.mxu0 0
        %429 = vmatprep.subr.bf16.mxu0 0
        %430 = vmatpush1.bf16.msra.mxu0 0
        %431 = vmatprep.subr.bf16.mxu0 0
        %432 = vmatpush1.bf16.msra.mxu0 0
        %433 = vmatprep.subr.bf16.mxu0 0
        %434 = vmatpush1.bf16.msra.mxu0 0
        %435 = vmatprep.subr.bf16.mxu0 0
        %436 = vmatpush1.bf16.msra.mxu0 0
        %437 = vmatprep.mubr.bf16.mxu0 0
        %438 = vmatmul.mubr.bf16.gmra.mrb[0].mxu0 %v308
        %v439 = vpop.f32.mrb[0].mxu0
        %v440 = vadd.f32 0.0, %v439
        %v441 = vpop.f32.mrb[0].mxu0
        %v442 = vadd.f32 0.0, %v441
        %v443 = vpop.f32.mrb[0].mxu0
        %v444 = vpop.f32.mrb[0].mxu0
        %445 = vdwg.mxu0
        %v446 = vpack.c.bf16 %v440, %v440
        %v447 = vpack.c.bf16 %v442, %v442
        %448 = vmatprep.subr.bf16.mxu0 0
        %449 = vmatpush1.bf16.xpose.msra.mxu0 %v308
        %450 = vmatprep.subr.bf16.mxu0 0
        %451 = vmatpush1.bf16.xpose.msra.mxu0 0
        %452 = vmatprep.subr.bf16.mxu0 0
        %453 = vmatpush1.bf16.xpose.msra.mxu0 0
        %454 = vmatprep.subr.bf16.mxu0 0
        %455 = vmatpush1.bf16.xpose.msra.mxu0 0
        %456 = vmatprep.subr.bf16.mxu0 0
        %457 = vmatpush1.bf16.xpose.msra.mxu0 0
        %458 = vmatprep.subr.bf16.mxu0 0
        %459 = vmatpush1.bf16.xpose.msra.mxu0 0
        %460 = vmatprep.subr.bf16.mxu0 0
        %461 = vmatpush1.bf16.xpose.msra.mxu0 0
        %462 = vmatprep.subr.bf16.mxu0 0
        %463 = vmatpush1.bf16.xpose.msra.mxu0 0
        %464 = vmatprep.subr.bf16.mxu0 0
        %465 = vmatpush1.bf16.xpose.msra.mxu0 0
        %466 = vmatprep.subr.bf16.mxu0 0
        %467 = vmatpush1.bf16.xpose.msra.mxu0 0
        %468 = vmatprep.subr.bf16.mxu0 0
        %469 = vmatpush1.bf16.xpose.msra.mxu0 0
        %470 = vmatprep.subr.bf16.mxu0 0
        %471 = vmatpush1.bf16.xpose.msra.mxu0 0
        %472 = vmatprep.subr.bf16.mxu0 0
        %473 = vmatpush1.bf16.xpose.msra.mxu0 0
        %474 = vmatprep.subr.bf16.mxu0 0
        %475 = vmatpush1.bf16.xpose.msra.mxu0 0
        %476 = vmatprep.subr.bf16.mxu0 0
        %477 = vmatpush1.bf16.xpose.msra.mxu0 0
        %478 = vmatprep.subr.bf16.mxu0 0
        %479 = vmatpush1.bf16.xpose.msra.mxu0 0
        %480 = vmatprep.mubr.bf16.mxu0 0
        %481 = vmatmul.mubr.bf16.gmra.mrb[0].mxu0 %v446
        %v482 = vpop.f32.mrb[0].mxu0
        %v483 = vadd.f32 0.0, %v482
        %v484 = vpop.f32.mrb[0].mxu0
        %v485 = vpop.f32.mrb[0].mxu0
        %v486 = vpop.f32.mrb[0].mxu0
        %487 = vdwg.mxu0
        %vm488 = vcmask 64512
        %v489 = vsel %vm488, %v483, -inf
        %490 = vmax.xlane.f32.xlu0 %v489
        %v491 = vpop.xlane.xlu0 %490
        %v492 = vsub.f32 %v483, %v491
        %v493 = vmul.f32 %v492, 1.442695
        %v494 = vpow.pop %v493
        %v495 = vsel %vm488, %v494, 0.0
        %496 = vadd.xlane.f32.xlu0 %v495
        %v497 = vpop.xlane.xlu0 %496
        %v498 = vrcp.pop %v497
        %v499 = vmul.f32 %v494, %v498
        %v500 = vpack.c.bf16 %v499, %v499
        %v501 = vunpack.c.l.bf16 %v308
        %v503 = vsel %vm488, %v500, 0
        %vm505 = vcmask 1043456
        %v507 = vsel %vm505, %v447, 0
        %509 = vmatprep.subr.bf16.mxu0 0
        %510 = vmatpush1.bf16.msra.mxu0 %v507
        %511 = vmatprep.subr.bf16.mxu0 0
        %512 = vmatpush1.bf16.msra.mxu0 0
        %513 = vmatprep.subr.bf16.mxu0 0
        %514 = vmatpush1.bf16.msra.mxu0 0
        %515 = vmatprep.subr.bf16.mxu0 0
        %516 = vmatpush1.bf16.msra.mxu0 0
        %517 = vmatprep.subr.bf16.mxu0 0
        %518 = vmatpush1.bf16.msra.mxu0 0
        %519 = vmatprep.subr.bf16.mxu0 0
        %520 = vmatpush1.bf16.msra.mxu0 0
        %521 = vmatprep.subr.bf16.mxu0 0
        %522 = vmatpush1.bf16.msra.mxu0 0
        %523 = vmatprep.subr.bf16.mxu0 0
        %524 = vmatpush1.bf16.msra.mxu0 0
        %525 = vmatprep.subr.bf16.mxu0 0
        %526 = vmatpush1.bf16.msra.mxu0 0
        %527 = vmatprep.subr.bf16.mxu0 0
        %528 = vmatpush1.bf16.msra.mxu0 0
        %529 = vmatprep.subr.bf16.mxu0 0
        %530 = vmatpush1.bf16.msra.mxu0 0
        %531 = vmatprep.subr.bf16.mxu0 0
        %532 = vmatpush1.bf16.msra.mxu0 0
        %533 = vmatprep.subr.bf16.mxu0 0
        %534 = vmatpush1.bf16.msra.mxu0 0
        %535 = vmatprep.subr.bf16.mxu0 0
        %536 = vmatpush1.bf16.msra.mxu0 0
        %537 = vmatprep.subr.bf16.mxu0 0
        %538 = vmatpush1.bf16.msra.mxu0 0
        %539 = vmatprep.subr.bf16.mxu0 0
        %540 = vmatpush1.bf16.msra.mxu0 0
        %541 = vmatprep.mubr.bf16.mxu0 0
        %542 = vmatmul.mubr.bf16.gmra.mrb[0].mxu0 %v503
        %v543 = vpop.f32.mrb[0].mxu0
        %v544 = vadd.f32 %v501, %v543
        %v545 = vpop.f32.mrb[0].mxu0
        %v546 = vpop.f32.mrb[0].mxu0
        %v547 = vpop.f32.mrb[0].mxu0
        %548 = vdwg.mxu0
        %549 = vadd.xlane.f32.xlu0 %v544
        %v550 = vpop.xlane.xlu0 %549
        %v551 = vrcp.pop 128.0
        %v552 = vmul.f32 %v550, %v551
        %v553 = vsub.f32 %v544, %v552
        %v554 = vmul.f32 %v553, %v553
        %555 = vadd.xlane.f32.xlu0 %v554
        %v556 = vpop.xlane.xlu0 %555
        %v557 = vmul.f32 %v556, %v551
        %v558 = vadd.f32 %v557, 1e-05
        %v559 = vrsqrt.pop %v558
        %v560 = vmul.f32 %v553, %v559
        %v561 = vld [vmem:[%s3] sm:$0x1]
        %v563 = vlaneseq
        %v564 = vshrl.u32 %v563, 7
        %v565 = vsub.s32 0, %v564
        %v566 = vrot.slane %v561, %v565
        %v568 = vmul.f32 %v560, %v566
        %v569 = vld [vmem:[%s4] sm:$0x1]
        %v571 = vlaneseq
        %v572 = vshrl.u32 %v571, 7
        %v573 = vsub.s32 0, %v572
        %v574 = vrot.slane %v569, %v573
        %v576 = vadd.f32 %v568, %v574
        %v577 = vpack.c.bf16 %v576, %v576
        %v578 = vld [vmem:[#allocation7] sm:$0xf]
        %v579 = vld [vmem:[#allocation7 + $0x4] sm:$0xf]
        %v580 = vld [vmem:[#allocation7 + $0x8] sm:$0xf]
        %v581 = vld [vmem:[#allocation7 + $0xc] sm:$0xf]
        %v582 = vld [vmem:[#allocation7 + $0x10] sm:$0xf]
        %v583 = vld [vmem:[#allocation7 + $0x14] sm:$0xf]
        %v584 = vld [vmem:[#allocation7 + $0x18] sm:$0xf]
        %v585 = vld [vmem:[#allocation7 + $0x1c] sm:$0xf]
        %v586 = vld [vmem:[#allocation7 + $0x20] sm:$0xf]
        %v587 = vld [vmem:[#allocation7 + $0x24] sm:$0xf]
        %v588 = vld [vmem:[#allocation7 + $0x28] sm:$0xf]
        %v589 = vld [vmem:[#allocation7 + $0x2c] sm:$0xf]
        %v590 = vld [vmem:[#allocation7 + $0x30] sm:$0xf]
        %v591 = vld [vmem:[#allocation7 + $0x34] sm:$0xf]
        %v592 = vld [vmem:[#allocation7 + $0x38] sm:$0xf]
        %v593 = vld [vmem:[#allocation7 + $0x3c] sm:$0xf]
        %v610 = vunpack.c.l.b16 %v578
        %v611 = vunpack.c.l.b16 %v579
        %v612 = vunpack.c.l.b16 %v580
        %v613 = vunpack.c.l.b16 %v581
        %v614 = vunpack.c.l.b16 %v582
        %v615 = vunpack.c.l.b16 %v583
        %v616 = vunpack.c.l.b16 %v584
        %v617 = vunpack.c.l.b16 %v585
        %v618 = vunpack.c.l.b16 %v586
        %v619 = vunpack.c.l.b16 %v587
        %v620 = vunpack.c.l.b16 %v588
        %v621 = vunpack.c.l.b16 %v589
        %v622 = vunpack.c.l.b16 %v590
        %v623 = vunpack.c.l.b16 %v591
        %v624 = vunpack.c.l.b16 %v592
        %v625 = vunpack.c.l.b16 %v593
        %v626 = vpack.c.b16 %v611, %v610
        %v627 = vpack.c.b16 %v613, %v612
        %v628 = vpack.c.b16 %v615, %v614
        %v629 = vpack.c.b16 %v617, %v616
        %v630 = vpack.c.b16 %v619, %v618
        %v631 = vpack.c.b16 %v621, %v620
        %v632 = vpack.c.b16 %v623, %v622
        %v633 = vpack.c.b16 %v625, %v624
        %642 = vmatprep.subr.bf16.mxu0 0
        %643 = vmatpush1.bf16.msra.mxu0 %v626
        %644 = vmatprep.subr.bf16.mxu0 0
        %645 = vmatpush1.bf16.msra.mxu0 %v627
        %646 = vmatprep.subr.bf16.mxu0 0
        %647 = vmatpush1.bf16.msra.mxu0 %v628
        %648 = vmatprep.subr.bf16.mxu0 0
        %649 = vmatpush1.bf16.msra.mxu0 %v629
        %650 = vmatprep.subr.bf16.mxu0 0
        %651 = vmatpush1.bf16.msra.mxu0 %v630
        %652 = vmatprep.subr.bf16.mxu0 0
        %653 = vmatpush1.bf16.msra.mxu0 %v631
        %654 = vmatprep.subr.bf16.mxu0 0
        %655 = vmatpush1.bf16.msra.mxu0 %v632
        %656 = vmatprep.subr.bf16.mxu0 0
        %657 = vmatpush1.bf16.msra.mxu0 %v633
        %658 = vmatprep.subr.bf16.mxu0 0
        %659 = vmatpush1.bf16.msra.mxu0 0
        %660 = vmatprep.subr.bf16.mxu0 0
        %661 = vmatpush1.bf16.msra.mxu0 0
        %662 = vmatprep.subr.bf16.mxu0 0
        %663 = vmatpush1.bf16.msra.mxu0 0
        %664 = vmatprep.subr.bf16.mxu0 0
        %665 = vmatpush1.bf16.msra.mxu0 0
        %666 = vmatprep.subr.bf16.mxu0 0
        %667 = vmatpush1.bf16.msra.mxu0 0
        %668 = vmatprep.subr.bf16.mxu0 0
        %669 = vmatpush1.bf16.msra.mxu0 0
        %670 = vmatprep.subr.bf16.mxu0 0
        %671 = vmatpush1.bf16.msra.mxu0 0
        %672 = vmatprep.subr.bf16.mxu0 0
        %673 = vmatpush1.bf16.msra.mxu0 0
        %674 = vmatprep.mubr.bf16.mxu0 0
        %675 = vmatmul.mubr.bf16.gmra.mrb[0].mxu0 %v577
        %v676 = vpop.f32.mrb[0].mxu0
        %v677 = vadd.f32 0.0, %v676
        %v678 = vpop.f32.mrb[0].mxu0
        %v679 = vpop.f32.mrb[0].mxu0
        %v680 = vpop.f32.mrb[0].mxu0
        %681 = vdwg.mxu0
        %682 = vst [vmem:[%s299] sm:$0xff] %v677
        %v683 = vsel %vm488, %v499, 0.0
        %684 = vst [vmem:[%s306] sm:$0xff] %v683
        %s685 = sand.u32 %s146, 1
        %s686 = scalar_lea.sflag [#allocation4], %s685
        %s687 = sand.u32 %s146, 1
        %s688 = smul.addr %s687, 8
        %s689 = scalar_lea.vmem [#allocation8], %s688
        %s690 = sand.u32 %s172, 1
        %s691 = scalar_lea.sflag [#allocation10], %s690
        %s692 = sand.u32 %s172, 1
        %s693 = smul.addr %s692, 8
        %s694 = scalar_lea.vmem [#allocation9], %s693
        // Predicated region
        $region53: #{tpu_custom_call.1} parent=39 // pred_check
          %p695 = pneg %p156
        $region54: #{tpu_custom_call.1} parent=39 // pred_check_branch
          %697 = sbr.rel (%p695) target = $region56
        $region55: #{tpu_custom_call.1} parent=39 // pred_region
          %s699 = ssub.s32 128, 128
          %700 = vsyncadd %s686, %s699
          %s701 = smul.addr %s28, 128
          %s702 = scalar_lea.hbm %s5, %s701
          %s704 = sshll.u32 %s689, 4
          %s705 = int_to_ptr.vmem [resolvable:$true] %s704
          %707 = dma.vmem_to_hbm [thread:$0]  %s705, 128, %s702, %s686
        $region56: #{tpu_custom_call.1} parent=39 // pred_fallthru
          _
        // Predicated region
        $region57: #{tpu_custom_call.1} parent=39 // pred_check
          %p708 = pneg %p182
        $region58: #{tpu_custom_call.1} parent=39 // pred_check_branch
          %710 = sbr.rel (%p708) target = $region60
        $region59: #{tpu_custom_call.1} parent=39 // pred_region
          %s712 = ssub.s32 128, 128
          %713 = vsyncadd %s691, %s712
          %s714 = smul.addr %s28, 128
          %s715 = scalar_lea.hbm %s6, %s714
          %s717 = sshll.u32 %s694, 4
          %s718 = int_to_ptr.vmem [resolvable:$true] %s717
          %720 = dma.vmem_to_hbm [thread:$0]  %s718, 128, %s715, %s691
        $region60: #{tpu_custom_call.1} parent=39 // pred_fallthru
          _
      $region40: #{tpu_custom_call.1} parent=5 // pred_fallthru
        _
      %p721 = scmp.le.s32.totalorder 2, %s23
      // Predicated region
      $region61: #{tpu_custom_call.1} parent=5 // pred_check
        %p722 = pneg %p721
      $region62: #{tpu_custom_call.1} parent=5 // pred_check_branch
        %724 = sbr.rel (%p722) target = $region64
      $region63: #{tpu_custom_call.1} parent=5 // pred_region
        %s725 = ssub.s32 %s23, 2
        // Predicated region
        $region65: #{tpu_custom_call.1} parent=63 // pred_check
          %p726 = pneg %p162
        $region66: #{tpu_custom_call.1} parent=63 // pred_check_branch
          %728 = sbr.rel (%p726) target = $region68
        $region67: #{tpu_custom_call.1} parent=63 // pred_region
          %s729 = sand.u32 %s147, 1
          %s730 = scalar_lea.sflag [#allocation4], %s729
          %s731 = sand.u32 %s147, 1
          %s732 = smul.addr %s731, 8
          %s733 = scalar_lea.vmem [#allocation8], %s732
          %734 = dma.done %s730, 128
        $region68: #{tpu_custom_call.1} parent=63 // pred_fallthru
          _
        // Predicated region
        $region69: #{tpu_custom_call.1} parent=63 // pred_check
          %p735 = pneg %p188
        $region70: #{tpu_custom_call.1} parent=63 // pred_check_branch
          %737 = sbr.rel (%p735) target = $region72
        $region71: #{tpu_custom_call.1} parent=63 // pred_region
          %s738 = sand.u32 %s173, 1
          %s739 = scalar_lea.sflag [#allocation10], %s738
          %s740 = sand.u32 %s173, 1
          %s741 = smul.addr %s740, 8
          %s742 = scalar_lea.vmem [#allocation9], %s741
          %743 = dma.done %s739, 128
        $region72: #{tpu_custom_call.1} parent=63 // pred_fallthru
          _
      $region64: #{tpu_custom_call.1} parent=5 // pred_fallthru
        _
    $region6: #{tpu_custom_call.1} parent=1 // loop_footer
      %s27 = sadd.s32 1, %s23
    $region7: #{tpu_custom_call.1} parent=1 // loop_footer_branch
      %22 = sbr.rel target = $region3
    $region8: #{tpu_custom_call.1} parent=1 // loop_exit
      _
    %744 = vsyncpa [#allocation3], 1
    %s745 = scalar_lea.sflag [#allocation3], 1
    %746 = vsyncpa %s745, 1
    %747 = vsyncpa [#allocation6], 1
    %748 = vsyncpa [#allocation4], 1
    %s749 = scalar_lea.sflag [#allocation4], 1
    %750 = vsyncpa %s749, 1
    %751 = vsyncpa [#allocation10], 1
    %s752 = scalar_lea.sflag [#allocation10], 1
    %753 = vsyncpa %s752, 1

</llo_original>
